<compile_context>
chip_gen: v7x
topology: tpu7x:2x2x1
jax: 0.10.0
libtpu: 0.0.40
codegen_flags: <defaults>
</compile_context>

<pallas_src>
import math

import jax
import jax.numpy as jnp
from jax.experimental import pallas as pl
from jax.experimental.pallas import tpu as pltpu

H1 = 128        # self.h1
H2 = 16         # self.h2
H2_PAD = 128    # H2 padded to a full lane width
LANE = 128


def _round_up(x, m):
    return (x + m - 1) // m * m


def _vmem_limit_bytes():
    # ~3/4 of physical VMEM: 96 MiB on v5e/v6e (128 MiB), 48 MiB on v7x (64 MiB).
    try:
        cap = pltpu.get_tpu_info().vmem_capacity_bytes
        return int(min(cap * 3 // 4, 100 * 1024 * 1024))
    except Exception:
        return 48 * 1024 * 1024


# ---------------------------------------------------------------------------
# Fused small-graph path: A fully resident in VMEM, read from HBM once.
#   out = PReLU(A @ PReLU((A @ X) @ W1 + b1) @ W2 + b2) @ Wf + bf
# ---------------------------------------------------------------------------
def fused_kernel(a_ref, x_ref, w1_ref, b1_ref, w2_ref, b2_ref, wf_ref, bf_ref,
                 alpha_ref, out_ref):
    alpha = alpha_ref[0]                                    # SMEM scalar
    a = a_ref[...]
    ax = jnp.dot(a, x_ref[...], preferred_element_type=jnp.float32)
    h1 = jnp.dot(ax.astype(jnp.bfloat16), w1_ref[...],
                 preferred_element_type=jnp.float32) + b1_ref[...]
    h1 = jnp.where(h1 > 0.0, h1, alpha * h1)                # PReLU (single select)
    # TODO(synk): dropout(p=0.5, training=True) treated as identity.
    g = jnp.dot(h1.astype(jnp.bfloat16), w2_ref[...],
                preferred_element_type=jnp.float32)
    h2 = jnp.dot(a, g.astype(jnp.bfloat16),
                 preferred_element_type=jnp.float32) + b2_ref[...]
    h2 = jnp.where(h2 > 0.0, h2, alpha * h2)
    out_ref[...] = (jnp.dot(h2.astype(jnp.bfloat16), wf_ref[...],
                            preferred_element_type=jnp.float32)
                    + bf_ref[...]).astype(out_ref.dtype)


# ---------------------------------------------------------------------------
# Stage 1 (K-tiled):  acc += A[i, k] @ X[k];  at k == last:
#   G[i] = PReLU(acc @ W1 + b1) @ W2
# ---------------------------------------------------------------------------
def gcn_stage1_kernel(a_ref, x_ref, w1_ref, b1_ref, w2_ref, alpha_ref,
                      g_ref, acc_ref):
    k = pl.program_id(1)

    @pl.when(k == 0)
    def _():
        acc_ref[...] = jnp.zeros_like(acc_ref)

    acc_ref[...] += jnp.dot(a_ref[...], x_ref[...],
                            preferred_element_type=jnp.float32)

    @pl.when(k == pl.num_programs(1) - 1)
    def _():
        alpha = alpha_ref[0]
        h = jnp.dot(acc_ref[...].astype(jnp.bfloat16), w1_ref[...],
                    preferred_element_type=jnp.float32) + b1_ref[...]
        h = jnp.where(h > 0.0, h, alpha * h)                # PReLU
        # TODO(synk): dropout(p=0.5, training=True) treated as identity.
        g_ref[...] = jnp.dot(h.astype(jnp.bfloat16), w2_ref[...],
                             preferred_element_type=jnp.float32
                             ).astype(g_ref.dtype)


# ---------------------------------------------------------------------------
# Stage 2 (K-tiled):  acc += A[i, k] @ G[k];  at k == last:
#   out[i] = PReLU(acc + b2) @ Wf + bf
# ---------------------------------------------------------------------------
def gcn_stage2_kernel(a_ref, g_ref, b2_ref, wf_ref, bf_ref, alpha_ref,
                      out_ref, acc_ref):
    k = pl.program_id(1)

    @pl.when(k == 0)
    def _():
        acc_ref[...] = jnp.zeros_like(acc_ref)

    acc_ref[...] += jnp.dot(a_ref[...], g_ref[...],
                            preferred_element_type=jnp.float32)

    @pl.when(k == pl.num_programs(1) - 1)
    def _():
        alpha = alpha_ref[0]
        h = acc_ref[...] + b2_ref[...]
        h = jnp.where(h > 0.0, h, alpha * h)                # PReLU
        out_ref[...] = (jnp.dot(h.astype(jnp.bfloat16), wf_ref[...],
                                preferred_element_type=jnp.float32)
                        + bf_ref[...]).astype(out_ref.dtype)


def _a_blockspec(tile, tk):
    # Deeper buffering hides DMA jitter; fall back gracefully if the kwarg is
    # unavailable in this JAX version.
    try:
        return pl.BlockSpec((tile, tk), lambda i, k: (i, k),
                            pipeline_mode=pl.Buffered(3))
    except TypeError:
        return pl.BlockSpec((tile, tk), lambda i, k: (i, k))


def ppmi_gcn_classifier(a_hat, x, params, *, row_tile=512, k_tile=2048,
                        fused_max_n=2048):
    """Forward pass of PPMIGCNClassifier (inference semantics)."""
    n, in_dim = x.shape
    out_dim = params["wf"].shape[1]
    out_pad = _round_up(out_dim, LANE)
    bf16 = jnp.bfloat16
    vmem_limit = _vmem_limit_bytes()

    use_fused = n <= fused_max_n
    if use_fused:
        n_pad = _round_up(max(n, LANE), LANE)
    else:
        tile, tk = row_tile, k_tile
        n_pad = _round_up(n, math.lcm(tile, tk))

    # Pad node dimension (zero rows/cols contribute nothing through A) and cast
    # MXU operands to bf16; biases stay f32 (added to f32 accumulators).
    a_p = jnp.zeros((n_pad, n_pad), bf16).at[:n, :n].set(a_hat.astype(bf16))
    x_p = jnp.zeros((n_pad, in_dim), bf16).at[:n, :].set(x.astype(bf16))
    w1 = params["w1"].astype(bf16)                                     # (in_dim, H1)
    b1 = params["b1"].astype(jnp.float32)                              # (1, H1)
    w2p = jnp.zeros((H1, H2_PAD), bf16).at[:, :H2].set(params["w2"].astype(bf16))
    b2p = jnp.zeros((1, H2_PAD), jnp.float32).at[:, :H2].set(params["b2"])
    wfp = jnp.zeros((H2_PAD, out_pad), bf16).at[:H2, :out_dim].set(
        params["wf"].astype(bf16))
    bfp = jnp.zeros((1, out_pad), jnp.float32).at[:, :out_dim].set(params["bf"])
    alpha = params["alpha"].reshape(-1).astype(jnp.float32)            # (1,) scalar

    smem_spec = pl.BlockSpec(memory_space=pltpu.MemorySpace.SMEM)

    if use_fused:
        # ---- Small graphs: single pass, A resident, read from HBM once -----
        out = pl.pallas_call(
            fused_kernel,
            out_shape=jax.ShapeDtypeStruct((n_pad, out_pad), bf16),
            grid=(1,),
            in_specs=[
                pl.BlockSpec((n_pad, n_pad), lambda i: (0, 0)),   # A resident
                pl.BlockSpec((n_pad, in_dim), lambda i: (0, 0)),  # X
                pl.BlockSpec((in_dim, H1), lambda i: (0, 0)),     # W1
                pl.BlockSpec((1, H1), lambda i: (0, 0)),          # b1
                pl.BlockSpec((H1, H2_PAD), lambda i: (0, 0)),     # W2 (lane-padded)
                pl.BlockSpec((1, H2_PAD), lambda i: (0, 0)),      # b2
                pl.BlockSpec((H2_PAD, out_pad), lambda i: (0, 0)),  # Wf
                pl.BlockSpec((1, out_pad), lambda i: (0, 0)),     # bf
                smem_spec,                                        # alpha
            ],
            out_specs=pl.BlockSpec((n_pad, out_pad), lambda i: (0, 0)),
            compiler_params=pltpu.CompilerParams(
                dimension_semantics=("arbitrary",),
                vmem_limit_bytes=vmem_limit),
        )(a_p, x_p, w1, b1, w2p, b2p, wfp, bfp, alpha)
        return out[:n, :out_dim].astype(jnp.float32)

    # ---- Large graphs: two K-tiled, row-parallel passes ---------------------
    grid = (n_pad // tile, n_pad // tk)
    cparams = pltpu.CompilerParams(
        dimension_semantics=("parallel", "arbitrary"),
        vmem_limit_bytes=vmem_limit)
    a_spec = _a_blockspec(tile, tk)

    # Stage 1: G = PReLU((A @ X) @ W1 + b1) @ W2   (inter-stage activation, bf16)
    g = pl.pallas_call(
        gcn_stage1_kernel,
        out_shape=jax.ShapeDtypeStruct((n_pad, H2_PAD), bf16),
        grid=grid,
        in_specs=[
            a_spec,                                              # A (tile, tk)
            pl.BlockSpec((tk, in_dim), lambda i, k: (k, 0)),     # X k-slab
            pl.BlockSpec((in_dim, H1), lambda i, k: (0, 0)),     # W1
            pl.BlockSpec((1, H1), lambda i, k: (0, 0)),          # b1
            pl.BlockSpec((H1, H2_PAD), lambda i, k: (0, 0)),     # W2
            smem_spec,                                           # alpha
        ],
        out_specs=pl.BlockSpec((tile, H2_PAD), lambda i, k: (i, 0)),
        scratch_shapes=[pltpu.VMEM((tile, in_dim), jnp.float32)],
        compiler_params=cparams,
    )(a_p, x_p, w1, b1, w2p, alpha)

    # Stage 2: out = PReLU(A @ G + b2) @ Wf + bf
    out = pl.pallas_call(
        gcn_stage2_kernel,
        out_shape=jax.ShapeDtypeStruct((n_pad, out_pad), bf16),
        grid=grid,
        in_specs=[
            a_spec,                                              # A (tile, tk)
            pl.BlockSpec((tk, H2_PAD), lambda i, k: (k, 0)),     # G k-slab
            pl.BlockSpec((1, H2_PAD), lambda i, k: (0, 0)),      # b2
            pl.BlockSpec((H2_PAD, out_pad), lambda i, k: (0, 0)),  # Wf
            pl.BlockSpec((1, out_pad), lambda i, k: (0, 0)),     # bf
            smem_spec,                                           # alpha
        ],
        out_specs=pl.BlockSpec((tile, out_pad), lambda i, k: (i, 0)),
        scratch_shapes=[pltpu.VMEM((tile, H2_PAD), jnp.float32)],
        compiler_params=cparams,
    )(a_p, g, b2p, wfp, bfp, alpha)

    return out[:n, :out_dim].astype(jnp.float32)


def build_norm_adj(edge_index, edge_attr, num_nodes):
    """Dense D^{-1/2} (A_w + I) D^{-1/2}, matching torch_geometric gcn_norm."""
    src, dst = edge_index[0], edge_index[1]
    loop = jnp.arange(num_nodes, dtype=edge_index.dtype)
    src = jnp.concatenate([src, loop])
    dst = jnp.concatenate([dst, loop])
    w = jnp.concatenate([edge_attr.astype(jnp.float32),
                         jnp.ones((num_nodes,), jnp.float32)])
    # A[target, source] accumulates edge weights (duplicate edges add).
    adj = jnp.zeros((num_nodes, num_nodes), jnp.float32).at[dst, src].add(w)
    deg = adj.sum(axis=1)                       # scatter_add of w over targets
    d_inv_sqrt = jnp.where(deg > 0.0, 1.0 / jnp.sqrt(deg), 0.0)
    return d_inv_sqrt[:, None] * adj * d_inv_sqrt[None, :]


def reference_forward(a_hat, x, params):
    """Pure-JAX f32 reference of the module's forward (dropout = identity)."""
    alpha = params["alpha"][0, 0]
    prelu = lambda h: jnp.where(h > 0.0, h, alpha * h)
    h1 = prelu(a_hat @ (x @ params["w1"]) + params["b1"])
    h2 = prelu(a_hat @ (h1 @ params["w2"]) + params["b2"])
    return h2 @ params["wf"] + params["bf"]


if __name__ == "__main__":
    INPUT_DIM = 16
    OUTPUT_DIM = 4

    def glorot(k, shape):
        lim = jnp.sqrt(6.0 / (shape[0] + shape[1]))
        return jax.random.uniform(k, shape, jnp.float32, -lim, lim)

    def make_problem(key, n, num_edges):
        k_x, k_src, k_dst, k_w, k1, k2, k3, k4 = jax.random.split(key, 8)
        x = jax.random.normal(k_x, (n, INPUT_DIM), jnp.float32)
        edge_index = jnp.stack([
            jax.random.randint(k_src, (num_edges,), 0, n, dtype=jnp.int32),
            jax.random.randint(k_dst, (num_edges,), 0, n, dtype=jnp.int32),
        ])
        edge_attr = jax.random.uniform(k_w, (num_edges,), jnp.float32, 0.1, 1.0)
        params = {
            "w1": glorot(k1, (INPUT_DIM, H1)),
            "b1": jnp.zeros((1, H1), jnp.float32),
            "w2": glorot(k2, (H1, H2)),
            "b2": jnp.zeros((1, H2), jnp.float32),
            "wf": glorot(k3, (H2, OUTPUT_DIM)),
            "bf": jax.random.uniform(k4, (1, OUTPUT_DIM), jnp.float32, -0.1, 0.1),
            "alpha": jnp.full((1, 1), 0.25, jnp.float32),   # nn.PReLU() init
        }
        a_hat = build_norm_adj(edge_index, edge_attr, n)
        return a_hat, x, params

    key = jax.random.PRNGKey(0)
    k_small, k_big = jax.random.split(key)

    # --- Test 1: demo size (N=32) -> fused single-pass path (A resident) ----
    a_hat, x, params = make_problem(k_small, 32, 96)
    logits = jax.block_until_ready(ppmi_gcn_classifier(a_hat, x, params))
    ref = reference_forward(a_hat, x, params)
    assert logits.shape == (32, OUTPUT_DIM)
    # bf16 MXU operands / bf16 stage outputs vs f32 reference -> relaxed tol.
    assert jnp.allclose(logits, ref, atol=3e-2, rtol=3e-2), (
        float(jnp.max(jnp.abs(logits - ref))))

    # --- Test 2: exercise the K-tiled two-stage path (grid = rows x K) ------
    a_hat2, x2, params2 = make_problem(k_big, 512, 4096)
    logits2 = jax.block_until_ready(
        ppmi_gcn_classifier(a_hat2, x2, params2,
                            row_tile=256, k_tile=256, fused_max_n=0))
    ref2 = reference_forward(a_hat2, x2, params2)
    assert logits2.shape == (512, OUTPUT_DIM)
    assert jnp.allclose(logits2, ref2, atol=3e-2, rtol=3e-2), (
        float(jnp.max(jnp.abs(logits2 - ref2))))

    print("KERNEL_OK")
</pallas_src>

<mosaic_0001>
module attributes {stable_mosaic.version = 11 : i64} {
  func.func @fused_kernel(%arg0: i32, %arg1: memref<128x128xbf16, #tpu.memory_space<vmem>>, %arg2: memref<128x16xbf16, #tpu.memory_space<vmem>>, %arg3: memref<16x128xbf16, #tpu.memory_space<vmem>>, %arg4: memref<1x128xf32, #tpu.memory_space<vmem>>, %arg5: memref<128x128xbf16, #tpu.memory_space<vmem>>, %arg6: memref<1x128xf32, #tpu.memory_space<vmem>>, %arg7: memref<128x128xbf16, #tpu.memory_space<vmem>>, %arg8: memref<1x128xf32, #tpu.memory_space<vmem>>, %arg9: memref<1xf32, #tpu.memory_space<smem>>, %arg10: memref<128x128xbf16, #tpu.memory_space<vmem>>) attributes {dimension_semantics = [#tpu.dimension_semantics<arbitrary>], iteration_bounds = array<i64: 1>, scalar_prefetch = 0 : i64, scratch_operands = 0 : i64, tpu.core_type = #tpu.core_type<tc>, window_params = [{pipeline_mode = #tpu.pipeline_mode<synchronous>, transform_indices = @transform_0, window_bounds = array<i64: 128, 128>}, {pipeline_mode = #tpu.pipeline_mode<synchronous>, transform_indices = @transform_1, window_bounds = array<i64: 128, 16>}, {pipeline_mode = #tpu.pipeline_mode<synchronous>, transform_indices = @transform_2, window_bounds = array<i64: 16, 128>}, {pipeline_mode = #tpu.pipeline_mode<synchronous>, transform_indices = @transform_3, window_bounds = array<i64: 1, 128>}, {pipeline_mode = #tpu.pipeline_mode<synchronous>, transform_indices = @transform_4, window_bounds = array<i64: 128, 128>}, {pipeline_mode = #tpu.pipeline_mode<synchronous>, transform_indices = @transform_5, window_bounds = array<i64: 1, 128>}, {pipeline_mode = #tpu.pipeline_mode<synchronous>, transform_indices = @transform_6, window_bounds = array<i64: 128, 128>}, {pipeline_mode = #tpu.pipeline_mode<synchronous>, transform_indices = @transform_7, window_bounds = array<i64: 1, 128>}, {transform_indices = @transform_8, window_bounds = array<i64: 1>}, {pipeline_mode = #tpu.pipeline_mode<synchronous>, transform_indices = @transform_9, window_bounds = array<i64: 128, 128>}]} {
    %c0 = arith.constant 0 : index
    %0 = memref.load %arg9[%c0] : memref<1xf32, #tpu.memory_space<smem>>
    %c0_0 = arith.constant 0 : index
    %c0_1 = arith.constant 0 : index
    %1 = vector.load %arg1[%c0_0, %c0_1] : memref<128x128xbf16, #tpu.memory_space<vmem>>, vector<128x128xbf16>
    %c0_2 = arith.constant 0 : index
    %c0_3 = arith.constant 0 : index
    %2 = vector.load %arg2[%c0_2, %c0_3] : memref<128x16xbf16, #tpu.memory_space<vmem>>, vector<128x16xbf16>
    %cst = arith.constant dense<0.000000e+00> : vector<128x16xf32>
    %3 = tpu.matmul %1, %2, %cst {dimension_numbers = #tpu.dot_dimension_numbers<[1], [0], [0], [1], [0, 0, 1, 1], [], []>} : vector<128x128xbf16>, vector<128x16xbf16>, vector<128x16xf32> -> vector<128x16xf32>
    %4 = arith.truncf %3 : vector<128x16xf32> to vector<128x16xbf16>
    %c0_4 = arith.constant 0 : index
    %c0_5 = arith.constant 0 : index
    %5 = vector.load %arg3[%c0_4, %c0_5] : memref<16x128xbf16, #tpu.memory_space<vmem>>, vector<16x128xbf16>
    %cst_6 = arith.constant dense<0.000000e+00> : vector<128x128xf32>
    %6 = tpu.matmul %4, %5, %cst_6 {dimension_numbers = #tpu.dot_dimension_numbers<[1], [0], [0], [1], [0, 0, 1, 1], [], []>} : vector<128x16xbf16>, vector<16x128xbf16>, vector<128x128xf32> -> vector<128x128xf32>
    %c0_7 = arith.constant 0 : index
    %c0_8 = arith.constant 0 : index
    %7 = vector.load %arg4[%c0_7, %c0_8] : memref<1x128xf32, #tpu.memory_space<vmem>>, vector<1x128xf32>
    %8 = vector.broadcast %7 : vector<1x128xf32> to vector<128x128xf32>
    %9 = arith.addf %6, %8 : vector<128x128xf32>
    %cst_9 = arith.constant 0.000000e+00 : f32
    %10 = vector.broadcast %cst_9 : f32 to vector<128x128xf32>
    %11 = arith.cmpf ogt, %9, %10 : vector<128x128xf32>
    %12 = vector.broadcast %0 : f32 to vector<128x128xf32>
    %13 = arith.mulf %12, %9 : vector<128x128xf32>
    %14 = arith.select %11, %9, %13 : vector<128x128xi1>, vector<128x128xf32>
    %15 = arith.truncf %14 : vector<128x128xf32> to vector<128x128xbf16>
    %c0_10 = arith.constant 0 : index
    %c0_11 = arith.constant 0 : index
    %16 = vector.load %arg5[%c0_10, %c0_11] : memref<128x128xbf16, #tpu.memory_space<vmem>>, vector<128x128xbf16>
    %cst_12 = arith.constant dense<0.000000e+00> : vector<128x128xf32>
    %17 = tpu.matmul %15, %16, %cst_12 {dimension_numbers = #tpu.dot_dimension_numbers<[1], [0], [0], [1], [0, 0, 1, 1], [], []>} : vector<128x128xbf16>, vector<128x128xbf16>, vector<128x128xf32> -> vector<128x128xf32>
    %18 = arith.truncf %17 : vector<128x128xf32> to vector<128x128xbf16>
    %cst_13 = arith.constant dense<0.000000e+00> : vector<128x128xf32>
    %19 = tpu.matmul %1, %18, %cst_13 {dimension_numbers = #tpu.dot_dimension_numbers<[1], [0], [0], [1], [0, 0, 1, 1], [], []>} : vector<128x128xbf16>, vector<128x128xbf16>, vector<128x128xf32> -> vector<128x128xf32>
    %c0_14 = arith.constant 0 : index
    %c0_15 = arith.constant 0 : index
    %20 = vector.load %arg6[%c0_14, %c0_15] : memref<1x128xf32, #tpu.memory_space<vmem>>, vector<1x128xf32>
    %21 = vector.broadcast %20 : vector<1x128xf32> to vector<128x128xf32>
    %22 = arith.addf %19, %21 : vector<128x128xf32>
    %cst_16 = arith.constant 0.000000e+00 : f32
    %23 = vector.broadcast %cst_16 : f32 to vector<128x128xf32>
    %24 = arith.cmpf ogt, %22, %23 : vector<128x128xf32>
    %25 = vector.broadcast %0 : f32 to vector<128x128xf32>
    %26 = arith.mulf %25, %22 : vector<128x128xf32>
    %27 = arith.select %24, %22, %26 : vector<128x128xi1>, vector<128x128xf32>
    %28 = arith.truncf %27 : vector<128x128xf32> to vector<128x128xbf16>
    %c0_17 = arith.constant 0 : index
    %c0_18 = arith.constant 0 : index
    %29 = vector.load %arg7[%c0_17, %c0_18] : memref<128x128xbf16, #tpu.memory_space<vmem>>, vector<128x128xbf16>
    %cst_19 = arith.constant dense<0.000000e+00> : vector<128x128xf32>
    %30 = tpu.matmul %28, %29, %cst_19 {dimension_numbers = #tpu.dot_dimension_numbers<[1], [0], [0], [1], [0, 0, 1, 1], [], []>} : vector<128x128xbf16>, vector<128x128xbf16>, vector<128x128xf32> -> vector<128x128xf32>
    %c0_20 = arith.constant 0 : index
    %c0_21 = arith.constant 0 : index
    %31 = vector.load %arg8[%c0_20, %c0_21] : memref<1x128xf32, #tpu.memory_space<vmem>>, vector<1x128xf32>
    %32 = vector.broadcast %31 : vector<1x128xf32> to vector<128x128xf32>
    %33 = arith.addf %30, %32 : vector<128x128xf32>
    %34 = arith.truncf %33 : vector<128x128xf32> to vector<128x128xbf16>
    %c0_22 = arith.constant 0 : index
    %c0_23 = arith.constant 0 : index
    %35 = vector.load %arg10[%c0_22, %c0_23] : memref<128x128xbf16, #tpu.memory_space<vmem>>, vector<128x128xbf16>
    tpu.vector_store %arg10[%c0_22, %c0_23], %34 {strides = array<i32>} : memref<128x128xbf16, #tpu.memory_space<vmem>>, vector<128x128xbf16>,
    return
  }
  func.func @transform_0(%arg0: i32) -> (i32, i32) {
    %c0_i32 = arith.constant 0 : i32
    %c0_i32_0 = arith.constant 0 : i32
    %c0_i32_1 = arith.constant 0 : i32
    return %c0_i32, %c0_i32_0 : i32, i32
  }
  func.func @transform_1(%arg0: i32) -> (i32, i32) {
    %c0_i32 = arith.constant 0 : i32
    %c0_i32_0 = arith.constant 0 : i32
    %c0_i32_1 = arith.constant 0 : i32
    return %c0_i32, %c0_i32_0 : i32, i32
  }
  func.func @transform_2(%arg0: i32) -> (i32, i32) {
    %c0_i32 = arith.constant 0 : i32
    %c0_i32_0 = arith.constant 0 : i32
    %c0_i32_1 = arith.constant 0 : i32
    return %c0_i32, %c0_i32_0 : i32, i32
  }
  func.func @transform_3(%arg0: i32) -> (i32, i32) {
    %c0_i32 = arith.constant 0 : i32
    %c0_i32_0 = arith.constant 0 : i32
    %c0_i32_1 = arith.constant 0 : i32
    return %c0_i32, %c0_i32_0 : i32, i32
  }
  func.func @transform_4(%arg0: i32) -> (i32, i32) {
    %c0_i32 = arith.constant 0 : i32
    %c0_i32_0 = arith.constant 0 : i32
    %c0_i32_1 = arith.constant 0 : i32
    return %c0_i32, %c0_i32_0 : i32, i32
  }
  func.func @transform_5(%arg0: i32) -> (i32, i32) {
    %c0_i32 = arith.constant 0 : i32
    %c0_i32_0 = arith.constant 0 : i32
    %c0_i32_1 = arith.constant 0 : i32
    return %c0_i32, %c0_i32_0 : i32, i32
  }
  func.func @transform_6(%arg0: i32) -> (i32, i32) {
    %c0_i32 = arith.constant 0 : i32
    %c0_i32_0 = arith.constant 0 : i32
    %c0_i32_1 = arith.constant 0 : i32
    return %c0_i32, %c0_i32_0 : i32, i32
  }
  func.func @transform_7(%arg0: i32) -> (i32, i32) {
    %c0_i32 = arith.constant 0 : i32
    %c0_i32_0 = arith.constant 0 : i32
    %c0_i32_1 = arith.constant 0 : i32
    return %c0_i32, %c0_i32_0 : i32, i32
  }
  func.func @transform_8(%arg0: i32) -> i32 {
    %c0_i32 = arith.constant 0 : i32
    %c0_i32_0 = arith.constant 0 : i32
    return %c0_i32 : i32
  }
  func.func @transform_9(%arg0: i32) -> (i32, i32) {
    %c0_i32 = arith.constant 0 : i32
    %c0_i32_0 = arith.constant 0 : i32
    %c0_i32_1 = arith.constant 0 : i32
    return %c0_i32, %c0_i32_0 : i32, i32
  }
}

</mosaic_0001>

<llo_original>
// kernel: tpu_custom_call.1
$region0: #{tpu_custom_call.1}
  #allocation0 [shape = 'u32[]', space=smem, size = 0x4, offset = 0x4, fixed_abs, tag = 'smem constant byte address 0x4 - core index']
  #allocation1 [shape = 'u32[144,128]{1,0:T(1,128)}', space=vmem, size = 0x12000, scoped, tag = 'internal scratch']
  #allocation2 [shape = 'f32[1]{0:T(128)S(6)}', space=smem, size = 0x200, scoped, tag = 'scoped memory for tpu_custom_call.1']
  %s0 = inlined_call_operand.vmem [shape: bf16[128,128], index: 0, kind: input, shape index: {}]
  %s1 = inlined_call_operand.vmem [shape: bf16[128,16], index: 1, kind: input, shape index: {}]
  %s2 = inlined_call_operand.vmem [shape: bf16[16,128], index: 2, kind: input, shape index: {}]
  %s3 = inlined_call_operand.vmem [shape: f32[1,128], index: 3, kind: input, shape index: {}]
  %s4 = inlined_call_operand.hbm [shape: bf16[128,128], index: 4, kind: input, shape index: {}]
  %s5 = inlined_call_operand.vmem [shape: f32[1,128], index: 5, kind: input, shape index: {}]
  %s6 = inlined_call_operand.hbm [shape: bf16[128,128], index: 6, kind: input, shape index: {}]
  %s7 = inlined_call_operand.vmem [shape: f32[1,128], index: 7, kind: input, shape index: {}]
  %s8 = inlined_call_operand.<no memory space> [shape: f32[1], index: 8, kind: input, shape index: {}]
  %s9 = inlined_call_operand.hbm [shape: bf16[128,128], index: 9, kind: output, shape index: {}]
  %s10 = sld [smem:[#allocation0]]
  $region54: #{tpu_custom_call.1} parent=0
    _
  %s12 = ssub.s32 1, %s10
  %s13 = scalar_select 0, %s12, %s10
  %14 = sst [smem:[#allocation2]] %s8
  $region1: #{tpu_custom_call.1} parent=0
    #allocation3 [shape = 'u8[32768]{0}', space=vmem, size = 0x8000, scoped, tag = 'input window, operand 4, single buffered']
    #allocation4 [shape = 's32[1]{0}', space=sflag, size = 0x4, scoped, tag = 'scoped memory for tpu_custom_call.1']
    #allocation5 [shape = 's32[1]{0}', space=sflag, size = 0x4, scoped, tag = 'scoped memory for tpu_custom_call.1']
    #allocation6 [shape = 'u8[32768]{0}', space=vmem, size = 0x8000, scoped, tag = 'input window, operand 6, single buffered']
    #allocation7 [shape = 's32[1]{0}', space=sflag, size = 0x4, scoped, tag = 'scoped memory for tpu_custom_call.1']
    #allocation8 [shape = 'u8[32768]{0}', space=vmem, size = 0x8000, scoped, tag = 'output window, operand 0, single buffered']
    %15 = vsyncpa [#allocation4], 0
    %16 = vsyncpa [#allocation7], 0
    %17 = vsyncpa [#allocation5], 0
    // Predicated region
    $region2: #{tpu_custom_call.1} parent=1 // pred_check
      _
    $region3: #{tpu_custom_call.1} parent=1 // pred_check_branch
      %19 = sbr.rel (0) target = $region5
    $region4: #{tpu_custom_call.1} parent=1 // pred_region
      _
    $region5: #{tpu_custom_call.1} parent=1 // pred_fallthru
      _
    // Predicated region
    $region6: #{tpu_custom_call.1} parent=1 // pred_check
      _
    $region7: #{tpu_custom_call.1} parent=1 // pred_check_branch
      %21 = sbr.rel (0) target = $region9
    $region8: #{tpu_custom_call.1} parent=1 // pred_region
      _
    $region9: #{tpu_custom_call.1} parent=1 // pred_fallthru
      _
    // Predicated region
    $region10: #{tpu_custom_call.1} parent=1 // pred_check
      _
    $region11: #{tpu_custom_call.1} parent=1 // pred_check_branch
      %23 = sbr.rel (0) target = $region13
    $region12: #{tpu_custom_call.1} parent=1 // pred_region
      _
    $region13: #{tpu_custom_call.1} parent=1 // pred_fallthru
      _
    // Predicated region
    $region14: #{tpu_custom_call.1} parent=1 // pred_check
      _
    $region15: #{tpu_custom_call.1} parent=1 // pred_check_branch
      %25 = sbr.rel (0) target = $region17
    $region16: #{tpu_custom_call.1} parent=1 // pred_region
      _
    $region17: #{tpu_custom_call.1} parent=1 // pred_fallthru
      _
    // Predicated region
    $region18: #{tpu_custom_call.1} parent=1 // pred_check
      _
    $region19: #{tpu_custom_call.1} parent=1 // pred_check_branch
      %27 = sbr.rel (0) target = $region21
    $region20: #{tpu_custom_call.1} parent=1 // pred_region
      %s29 = ssub.s32 1024, 1024
      %30 = vsyncadd [#allocation4], %s29
      %s31 = sshll.u32 [#allocation3], 4
      %s32 = int_to_ptr.vmem [resolvable:$true] %s31
      %37 = dma.hbm_to_vmem [thread:$0]  %s4, 1024, %s32, [#allocation4], 64, 64, 4
    $region21: #{tpu_custom_call.1} parent=1 // pred_fallthru
      _
    // Predicated region
    $region22: #{tpu_custom_call.1} parent=1 // pred_check
      _
    $region23: #{tpu_custom_call.1} parent=1 // pred_check_branch
      %39 = sbr.rel (0) target = $region25
    $region24: #{tpu_custom_call.1} parent=1 // pred_region
      _
    $region25: #{tpu_custom_call.1} parent=1 // pred_fallthru
      _
    // Predicated region
    $region26: #{tpu_custom_call.1} parent=1 // pred_check
      _
    $region27: #{tpu_custom_call.1} parent=1 // pred_check_branch
      %41 = sbr.rel (0) target = $region29
    $region28: #{tpu_custom_call.1} parent=1 // pred_region
      %s43 = ssub.s32 1024, 1024
      %44 = vsyncadd [#allocation7], %s43
      %s45 = sshll.u32 [#allocation6], 4
      %s46 = int_to_ptr.vmem [resolvable:$true] %s45
      %51 = dma.hbm_to_vmem [thread:$0]  %s6, 1024, %s46, [#allocation7], 64, 64, 4
    $region29: #{tpu_custom_call.1} parent=1 // pred_fallthru
      _
    // Predicated region
    $region30: #{tpu_custom_call.1} parent=1 // pred_check
      _
    $region31: #{tpu_custom_call.1} parent=1 // pred_check_branch
      %53 = sbr.rel (0) target = $region33
    $region32: #{tpu_custom_call.1} parent=1 // pred_region
      _
    $region33: #{tpu_custom_call.1} parent=1 // pred_fallthru
      _
    // Predicated region
    $region34: #{tpu_custom_call.1} parent=1 // pred_check
      _
    $region35: #{tpu_custom_call.1} parent=1 // pred_check_branch
      %55 = sbr.rel (0) target = $region37
    $region36: #{tpu_custom_call.1} parent=1 // pred_region
      _
    $region37: #{tpu_custom_call.1} parent=1 // pred_fallthru
      _
    // Predicated region
    $region38: #{tpu_custom_call.1} parent=1 // pred_check
      _
    $region39: #{tpu_custom_call.1} parent=1 // pred_check_branch
      %57 = sbr.rel (0) target = $region41
    $region40: #{tpu_custom_call.1} parent=1 // pred_region
      %58 = dma.done [#allocation4], 1024
    $region41: #{tpu_custom_call.1} parent=1 // pred_fallthru
      _
    // Predicated region
    $region42: #{tpu_custom_call.1} parent=1 // pred_check
      _
    $region43: #{tpu_custom_call.1} parent=1 // pred_check_branch
      %60 = sbr.rel (0) target = $region45
    $region44: #{tpu_custom_call.1} parent=1 // pred_region
      %61 = dma.done [#allocation7], 1024
    $region45: #{tpu_custom_call.1} parent=1 // pred_fallthru
      _
    %s63 = sld [smem:[#allocation2]]
    %v64 = vld [vmem:[%s0] sm:$0xf]
    %v65 = vld [vmem:[%s0 + $0x4] sm:$0xf]
    %v66 = vld [vmem:[%s0 + $0x8] sm:$0xf]
    %v67 = vld [vmem:[%s0 + $0xc] sm:$0xf]
    %v68 = vld [vmem:[%s0 + $0x10] sm:$0xf]
    %v69 = vld [vmem:[%s0 + $0x14] sm:$0xf]
    %v70 = vld [vmem:[%s0 + $0x18] sm:$0xf]
    %v71 = vld [vmem:[%s0 + $0x1c] sm:$0xf]
    %v72 = vld [vmem:[%s0 + $0x20] sm:$0xf]
    %v73 = vld [vmem:[%s0 + $0x24] sm:$0xf]
    %v74 = vld [vmem:[%s0 + $0x28] sm:$0xf]
    %v75 = vld [vmem:[%s0 + $0x2c] sm:$0xf]
    %v76 = vld [vmem:[%s0 + $0x30] sm:$0xf]
    %v77 = vld [vmem:[%s0 + $0x34] sm:$0xf]
    %v78 = vld [vmem:[%s0 + $0x38] sm:$0xf]
    %v79 = vld [vmem:[%s0 + $0x3c] sm:$0xf]
    %v80 = vld [vmem:[%s1] sm:$0xf]
    %v81 = vld [vmem:[%s1 + $0x4] sm:$0xf]
    %v82 = vld [vmem:[%s1 + $0x8] sm:$0xf]
    %v83 = vld [vmem:[%s1 + $0xc] sm:$0xf]
    %v84 = vld [vmem:[%s1 + $0x10] sm:$0xf]
    %v85 = vld [vmem:[%s1 + $0x14] sm:$0xf]
    %v86 = vld [vmem:[%s1 + $0x18] sm:$0xf]
    %v87 = vld [vmem:[%s1 + $0x1c] sm:$0xf]
    %v88 = vld [vmem:[%s1 + $0x20] sm:$0xf]
    %v89 = vld [vmem:[%s1 + $0x24] sm:$0xf]
    %v90 = vld [vmem:[%s1 + $0x28] sm:$0xf]
    %v91 = vld [vmem:[%s1 + $0x2c] sm:$0xf]
    %v92 = vld [vmem:[%s1 + $0x30] sm:$0xf]
    %v93 = vld [vmem:[%s1 + $0x34] sm:$0xf]
    %v94 = vld [vmem:[%s1 + $0x38] sm:$0xf]
    %v95 = vld [vmem:[%s1 + $0x3c] sm:$0xf]
    %v112 = vunpack.c.l.b16 %v64
    %v113 = vunpack.c.l.b16 %v65
    %v114 = vunpack.c.l.b16 %v66
    %v115 = vunpack.c.l.b16 %v67
    %v116 = vunpack.c.l.b16 %v68
    %v117 = vunpack.c.l.b16 %v69
    %v118 = vunpack.c.l.b16 %v70
    %v119 = vunpack.c.l.b16 %v71
    %v120 = vunpack.c.l.b16 %v72
    %v121 = vunpack.c.l.b16 %v73
    %v122 = vunpack.c.l.b16 %v74
    %v123 = vunpack.c.l.b16 %v75
    %v124 = vunpack.c.l.b16 %v76
    %v125 = vunpack.c.l.b16 %v77
    %v126 = vunpack.c.l.b16 %v78
    %v127 = vunpack.c.l.b16 %v79
    %v128 = vpack.c.b16 %v113, %v112
    %v129 = vpack.c.b16 %v115, %v114
    %v130 = vpack.c.b16 %v117, %v116
    %v131 = vpack.c.b16 %v119, %v118
    %v132 = vpack.c.b16 %v121, %v120
    %v133 = vpack.c.b16 %v123, %v122
    %v134 = vpack.c.b16 %v125, %v124
    %v135 = vpack.c.b16 %v127, %v126
    %v160 = vunpack.c.l.b16 %v80
    %v161 = vunpack.c.l.b16 %v81
    %v162 = vunpack.c.l.b16 %v82
    %v163 = vunpack.c.l.b16 %v83
    %v164 = vunpack.c.l.b16 %v84
    %v165 = vunpack.c.l.b16 %v85
    %v166 = vunpack.c.l.b16 %v86
    %v167 = vunpack.c.l.b16 %v87
    %v168 = vunpack.c.l.b16 %v88
    %v169 = vunpack.c.l.b16 %v89
    %v170 = vunpack.c.l.b16 %v90
    %v171 = vunpack.c.l.b16 %v91
    %v172 = vunpack.c.l.b16 %v92
    %v173 = vunpack.c.l.b16 %v93
    %v174 = vunpack.c.l.b16 %v94
    %v175 = vunpack.c.l.b16 %v95
    %v176 = vpack.c.b16 %v161, %v160
    %v177 = vpack.c.b16 %v163, %v162
    %v178 = vpack.c.b16 %v165, %v164
    %v179 = vpack.c.b16 %v167, %v166
    %v180 = vpack.c.b16 %v169, %v168
    %v181 = vpack.c.b16 %v171, %v170
    %v182 = vpack.c.b16 %v173, %v172
    %v183 = vpack.c.b16 %v175, %v174
    %192 = vmatprep.subr.bf16.mxu0 0
    %193 = vmatpush1.bf16.msra.mxu0 %v176
    %194 = vmatprep.subr.bf16.mxu0 0
    %195 = vmatpush1.bf16.msra.mxu0 %v177
    %196 = vmatprep.subr.bf16.mxu0 0
    %197 = vmatpush1.bf16.msra.mxu0 %v178
    %198 = vmatprep.subr.bf16.mxu0 0
    %199 = vmatpush1.bf16.msra.mxu0 %v179
    %200 = vmatprep.subr.bf16.mxu0 0
    %201 = vmatpush1.bf16.msra.mxu0 %v180
    %202 = vmatprep.subr.bf16.mxu0 0
    %203 = vmatpush1.bf16.msra.mxu0 %v181
    %204 = vmatprep.subr.bf16.mxu0 0
    %205 = vmatpush1.bf16.msra.mxu0 %v182
    %206 = vmatprep.subr.bf16.mxu0 0
    %207 = vmatpush1.bf16.msra.mxu0 %v183
    %208 = vmatprep.subr.bf16.mxu0 0
    %209 = vmatpush1.bf16.msra.mxu0 0
    %210 = vmatprep.subr.bf16.mxu0 0
    %211 = vmatpush1.bf16.msra.mxu0 0
    %212 = vmatprep.subr.bf16.mxu0 0
    %213 = vmatpush1.bf16.msra.mxu0 0
    %214 = vmatprep.subr.bf16.mxu0 0
    %215 = vmatpush1.bf16.msra.mxu0 0
    %216 = vmatprep.subr.bf16.mxu0 0
    %217 = vmatpush1.bf16.msra.mxu0 0
    %218 = vmatprep.subr.bf16.mxu0 0
    %219 = vmatpush1.bf16.msra.mxu0 0
    %220 = vmatprep.subr.bf16.mxu0 0
    %221 = vmatpush1.bf16.msra.mxu0 0
    %222 = vmatprep.subr.bf16.mxu0 0
    %223 = vmatpush1.bf16.msra.mxu0 0
    %224 = vmatprep.mubr.bf16.mxu0 0
    %225 = vmatmul.mubr.bf16.gmra.mrb[0].mxu0 %v128
    %v226 = vpop.f32.mrb[0].mxu0
    %v227 = vadd.f32 0.0, %v226
    %v228 = vpop.f32.mrb[0].mxu0
    %v229 = vpop.f32.mrb[0].mxu0
    %v230 = vadd.f32 0.0, %v229
    %v231 = vpop.f32.mrb[0].mxu0
    %232 = vmatprep.mubr.bf16.mxu0 0
    %233 = vmatmul.mubr.bf16.gmra.mrb[0].mxu0 %v129
    %v234 = vpop.f32.mrb[0].mxu0
    %v235 = vadd.f32 0.0, %v234
    %v236 = vpop.f32.mrb[0].mxu0
    %v237 = vpop.f32.mrb[0].mxu0
    %v238 = vadd.f32 0.0, %v237
    %v239 = vpop.f32.mrb[0].mxu0
    %240 = vmatprep.mubr.bf16.mxu0 0
    %241 = vmatmul.mubr.bf16.gmra.mrb[0].mxu0 %v130
    %v242 = vpop.f32.mrb[0].mxu0
    %v243 = vadd.f32 0.0, %v242
    %v244 = vpop.f32.mrb[0].mxu0
    %v245 = vpop.f32.mrb[0].mxu0
    %v246 = vadd.f32 0.0, %v245
    %v247 = vpop.f32.mrb[0].mxu0
    %248 = vmatprep.mubr.bf16.mxu0 0
    %249 = vmatmul.mubr.bf16.gmra.mrb[0].mxu0 %v131
    %v250 = vpop.f32.mrb[0].mxu0
    %v251 = vadd.f32 0.0, %v250
    %v252 = vpop.f32.mrb[0].mxu0
    %v253 = vpop.f32.mrb[0].mxu0
    %v254 = vadd.f32 0.0, %v253
    %v255 = vpop.f32.mrb[0].mxu0
    %256 = vmatprep.mubr.bf16.mxu0 0
    %257 = vmatmul.mubr.bf16.gmra.mrb[0].mxu0 %v132
    %v258 = vpop.f32.mrb[0].mxu0
    %v259 = vadd.f32 0.0, %v258
    %v260 = vpop.f32.mrb[0].mxu0
    %v261 = vpop.f32.mrb[0].mxu0
    %v262 = vadd.f32 0.0, %v261
    %v263 = vpop.f32.mrb[0].mxu0
    %264 = vmatprep.mubr.bf16.mxu0 0
    %265 = vmatmul.mubr.bf16.gmra.mrb[0].mxu0 %v133
    %v266 = vpop.f32.mrb[0].mxu0
    %v267 = vadd.f32 0.0, %v266
    %v268 = vpop.f32.mrb[0].mxu0
    %v269 = vpop.f32.mrb[0].mxu0
    %v270 = vadd.f32 0.0, %v269
    %v271 = vpop.f32.mrb[0].mxu0
    %272 = vmatprep.mubr.bf16.mxu0 0
    %273 = vmatmul.mubr.bf16.gmra.mrb[0].mxu0 %v134
    %v274 = vpop.f32.mrb[0].mxu0
    %v275 = vadd.f32 0.0, %v274
    %v276 = vpop.f32.mrb[0].mxu0
    %v277 = vpop.f32.mrb[0].mxu0
    %v278 = vadd.f32 0.0, %v277
    %v279 = vpop.f32.mrb[0].mxu0
    %280 = vmatprep.mubr.bf16.mxu0 0
    %281 = vmatmul.mubr.bf16.gmra.mrb[0].mxu0 %v135
    %v282 = vpop.f32.mrb[0].mxu0
    %v283 = vadd.f32 0.0, %v282
    %v284 = vpop.f32.mrb[0].mxu0
    %v285 = vpop.f32.mrb[0].mxu0
    %v286 = vadd.f32 0.0, %v285
    %v287 = vpop.f32.mrb[0].mxu0
    %288 = vdwg.mxu0
    %v289 = vpack.c.bf16 %v230, %v227
    %v290 = vpack.c.bf16 %v238, %v235
    %v291 = vpack.c.bf16 %v246, %v243
    %v292 = vpack.c.bf16 %v254, %v251
    %v293 = vpack.c.bf16 %v262, %v259
    %v294 = vpack.c.bf16 %v270, %v267
    %v295 = vpack.c.bf16 %v278, %v275
    %v296 = vpack.c.bf16 %v286, %v283
    %v297 = vld [vmem:[%s2] sm:$0xf]
    %v298 = vld [vmem:[%s2 + $0x4] sm:$0xf]
    %v299 = vld [vmem:[%s3] sm:$0x1]
    %v301 = vlaneseq
    %v302 = vshrl.u32 %v301, 7
    %v303 = vsub.s32 0, %v302
    %v304 = vrot.slane %v299, %v303
    %v308 = vunpack.c.l.b16 %v297
    %v309 = vunpack.c.l.b16 %v298
    %v310 = vpack.c.b16 %v309, %v308
    %vm312 = vcmask 130048
    %v314 = vsel %vm312, %v289, 0
    %v317 = vsel %vm312, %v290, 0
    %v320 = vsel %vm312, %v291, 0
    %v323 = vsel %vm312, %v292, 0
    %v326 = vsel %vm312, %v293, 0
    %v329 = vsel %vm312, %v294, 0
    %v332 = vsel %vm312, %v295, 0
    %v335 = vsel %vm312, %v296, 0
    %337 = vmatprep.subr.bf16.mxu0 0
    %338 = vmatpush1.bf16.msra.mxu0 %v310
    %339 = vmatprep.subr.bf16.mxu0 0
    %340 = vmatpush1.bf16.msra.mxu0 0
    %341 = vmatprep.subr.bf16.mxu0 0
    %342 = vmatpush1.bf16.msra.mxu0 0
    %343 = vmatprep.subr.bf16.mxu0 0
    %344 = vmatpush1.bf16.msra.mxu0 0
    %345 = vmatprep.subr.bf16.mxu0 0
    %346 = vmatpush1.bf16.msra.mxu0 0
    %347 = vmatprep.subr.bf16.mxu0 0
    %348 = vmatpush1.bf16.msra.mxu0 0
    %349 = vmatprep.subr.bf16.mxu0 0
    %350 = vmatpush1.bf16.msra.mxu0 0
    %351 = vmatprep.subr.bf16.mxu0 0
    %352 = vmatpush1.bf16.msra.mxu0 0
    %353 = vmatprep.subr.bf16.mxu0 0
    %354 = vmatpush1.bf16.msra.mxu0 0
    %355 = vmatprep.subr.bf16.mxu0 0
    %356 = vmatpush1.bf16.msra.mxu0 0
    %357 = vmatprep.subr.bf16.mxu0 0
    %358 = vmatpush1.bf16.msra.mxu0 0
    %359 = vmatprep.subr.bf16.mxu0 0
    %360 = vmatpush1.bf16.msra.mxu0 0
    %361 = vmatprep.subr.bf16.mxu0 0
    %362 = vmatpush1.bf16.msra.mxu0 0
    %363 = vmatprep.subr.bf16.mxu0 0
    %364 = vmatpush1.bf16.msra.mxu0 0
    %365 = vmatprep.subr.bf16.mxu0 0
    %366 = vmatpush1.bf16.msra.mxu0 0
    %367 = vmatprep.subr.bf16.mxu0 0
    %368 = vmatpush1.bf16.msra.mxu0 0
    %369 = vmatprep.mubr.bf16.mxu0 0
    %370 = vmatmul.mubr.bf16.gmra.mrb[0].mxu0 %v314
    %v371 = vpop.f32.mrb[0].mxu0
    %v372 = vadd.f32 %v304, %v371
    %v373 = vpop.f32.mrb[0].mxu0
    %v374 = vpop.f32.mrb[0].mxu0
    %v375 = vadd.f32 %v304, %v374
    %v376 = vpop.f32.mrb[0].mxu0
    %377 = vmatprep.mubr.bf16.mxu0 0
    %378 = vmatmul.mubr.bf16.gmra.mrb[0].mxu0 %v317
    %v379 = vpop.f32.mrb[0].mxu0
    %v380 = vadd.f32 %v304, %v379
    %v381 = vpop.f32.mrb[0].mxu0
    %v382 = vpop.f32.mrb[0].mxu0
    %v383 = vadd.f32 %v304, %v382
    %v384 = vpop.f32.mrb[0].mxu0
    %385 = vmatprep.mubr.bf16.mxu0 0
    %386 = vmatmul.mubr.bf16.gmra.mrb[0].mxu0 %v320
    %v387 = vpop.f32.mrb[0].mxu0
    %v388 = vadd.f32 %v304, %v387
    %v389 = vpop.f32.mrb[0].mxu0
    %v390 = vpop.f32.mrb[0].mxu0
    %v391 = vadd.f32 %v304, %v390
    %v392 = vpop.f32.mrb[0].mxu0
    %393 = vmatprep.mubr.bf16.mxu0 0
    %394 = vmatmul.mubr.bf16.gmra.mrb[0].mxu0 %v323
    %v395 = vpop.f32.mrb[0].mxu0
    %v396 = vadd.f32 %v304, %v395
    %v397 = vpop.f32.mrb[0].mxu0
    %v398 = vpop.f32.mrb[0].mxu0
    %v399 = vadd.f32 %v304, %v398
    %v400 = vpop.f32.mrb[0].mxu0
    %401 = vmatprep.mubr.bf16.mxu0 0
    %402 = vmatmul.mubr.bf16.gmra.mrb[0].mxu0 %v326
    %v403 = vpop.f32.mrb[0].mxu0
    %v404 = vadd.f32 %v304, %v403
    %v405 = vpop.f32.mrb[0].mxu0
    %v406 = vpop.f32.mrb[0].mxu0
    %v407 = vadd.f32 %v304, %v406
    %v408 = vpop.f32.mrb[0].mxu0
    %409 = vmatprep.mubr.bf16.mxu0 0
    %410 = vmatmul.mubr.bf16.gmra.mrb[0].mxu0 %v329
    %v411 = vpop.f32.mrb[0].mxu0
    %v412 = vadd.f32 %v304, %v411
    %v413 = vpop.f32.mrb[0].mxu0
    %v414 = vpop.f32.mrb[0].mxu0
    %v415 = vadd.f32 %v304, %v414
    %v416 = vpop.f32.mrb[0].mxu0
    %417 = vmatprep.mubr.bf16.mxu0 0
    %418 = vmatmul.mubr.bf16.gmra.mrb[0].mxu0 %v332
    %v419 = vpop.f32.mrb[0].mxu0
    %v420 = vadd.f32 %v304, %v419
    %v421 = vpop.f32.mrb[0].mxu0
    %v422 = vpop.f32.mrb[0].mxu0
    %v423 = vadd.f32 %v304, %v422
    %v424 = vpop.f32.mrb[0].mxu0
    %425 = vmatprep.mubr.bf16.mxu0 0
    %426 = vmatmul.mubr.bf16.gmra.mrb[0].mxu0 %v335
    %v427 = vpop.f32.mrb[0].mxu0
    %v428 = vadd.f32 %v304, %v427
    %v429 = vpop.f32.mrb[0].mxu0
    %v430 = vpop.f32.mrb[0].mxu0
    %v431 = vadd.f32 %v304, %v430
    %v432 = vpop.f32.mrb[0].mxu0
    %433 = vdwg.mxu0
    %vm434 = vcmp.gt.f32.partialorder %v372, 0.0
    %vm435 = vcmp.gt.f32.partialorder %v375, 0.0
    %vm436 = vcmp.gt.f32.partialorder %v380, 0.0
    %vm437 = vcmp.gt.f32.partialorder %v383, 0.0
    %vm438 = vcmp.gt.f32.partialorder %v388, 0.0
    %vm439 = vcmp.gt.f32.partialorder %v391, 0.0
    %vm440 = vcmp.gt.f32.partialorder %v396, 0.0
    %vm441 = vcmp.gt.f32.partialorder %v399, 0.0
    %vm442 = vcmp.gt.f32.partialorder %v404, 0.0
    %vm443 = vcmp.gt.f32.partialorder %v407, 0.0
    %vm444 = vcmp.gt.f32.partialorder %v412, 0.0
    %vm445 = vcmp.gt.f32.partialorder %v415, 0.0
    %vm446 = vcmp.gt.f32.partialorder %v420, 0.0
    %vm447 = vcmp.gt.f32.partialorder %v423, 0.0
    %vm448 = vcmp.gt.f32.partialorder %v428, 0.0
    %vm449 = vcmp.gt.f32.partialorder %v431, 0.0
    %v450 = vstv %s63
    %v451 = vmul.f32 %v450, %v372
    %v452 = vmul.f32 %v450, %v375
    %v453 = vmul.f32 %v450, %v380
    %v454 = vmul.f32 %v450, %v383
    %v455 = vmul.f32 %v450, %v388
    %v456 = vmul.f32 %v450, %v391
    %v457 = vmul.f32 %v450, %v396
    %v458 = vmul.f32 %v450, %v399
    %v459 = vmul.f32 %v450, %v404
    %v460 = vmul.f32 %v450, %v407
    %v461 = vmul.f32 %v450, %v412
    %v462 = vmul.f32 %v450, %v415
    %v463 = vmul.f32 %v450, %v420
    %v464 = vmul.f32 %v450, %v423
    %v465 = vmul.f32 %v450, %v428
    %v466 = vmul.f32 %v450, %v431
    %v467 = vsel %vm434, %v372, %v451
    %v468 = vsel %vm435, %v375, %v452
    %v469 = vsel %vm436, %v380, %v453
    %v470 = vsel %vm437, %v383, %v454
    %v471 = vsel %vm438, %v388, %v455
    %v472 = vsel %vm439, %v391, %v456
    %v473 = vsel %vm440, %v396, %v457
    %v474 = vsel %vm441, %v399, %v458
    %v475 = vsel %vm442, %v404, %v459
    %v476 = vsel %vm443, %v407, %v460
    %v477 = vsel %vm444, %v412, %v461
    %v478 = vsel %vm445, %v415, %v462
    %v479 = vsel %vm446, %v420, %v463
    %v480 = vsel %vm447, %v423, %v464
    %v481 = vsel %vm448, %v428, %v465
    %v482 = vsel %vm449, %v431, %v466
    %v483 = vpack.c.bf16 %v468, %v467
    %v484 = vpack.c.bf16 %v470, %v469
    %v485 = vpack.c.bf16 %v472, %v471
    %v486 = vpack.c.bf16 %v474, %v473
    %v487 = vpack.c.bf16 %v476, %v475
    %v488 = vpack.c.bf16 %v478, %v477
    %v489 = vpack.c.bf16 %v480, %v479
    %v490 = vpack.c.bf16 %v482, %v481
    %v491 = vld [vmem:[#allocation3] sm:$0xf]
    %v492 = vld [vmem:[#allocation3 + $0x4] sm:$0xf]
    %v493 = vld [vmem:[#allocation3 + $0x8] sm:$0xf]
    %v494 = vld [vmem:[#allocation3 + $0xc] sm:$0xf]
    %v495 = vld [vmem:[#allocation3 + $0x10] sm:$0xf]
    %v496 = vld [vmem:[#allocation3 + $0x14] sm:$0xf]
    %v497 = vld [vmem:[#allocation3 + $0x18] sm:$0xf]
    %v498 = vld [vmem:[#allocation3 + $0x1c] sm:$0xf]
    %v499 = vld [vmem:[#allocation3 + $0x20] sm:$0xf]
    %v500 = vld [vmem:[#allocation3 + $0x24] sm:$0xf]
    %v501 = vld [vmem:[#allocation3 + $0x28] sm:$0xf]
    %v502 = vld [vmem:[#allocation3 + $0x2c] sm:$0xf]
    %v503 = vld [vmem:[#allocation3 + $0x30] sm:$0xf]
    %v504 = vld [vmem:[#allocation3 + $0x34] sm:$0xf]
    %v505 = vld [vmem:[#allocation3 + $0x38] sm:$0xf]
    %v506 = vld [vmem:[#allocation3 + $0x3c] sm:$0xf]
    %v523 = vunpack.c.l.b16 %v491
    %v524 = vunpack.c.l.b16 %v492
    %v525 = vunpack.c.l.b16 %v493
    %v526 = vunpack.c.l.b16 %v494
    %v527 = vunpack.c.l.b16 %v495
    %v528 = vunpack.c.l.b16 %v496
    %v529 = vunpack.c.l.b16 %v497
    %v530 = vunpack.c.l.b16 %v498
    %v531 = vunpack.c.l.b16 %v499
    %v532 = vunpack.c.l.b16 %v500
    %v533 = vunpack.c.l.b16 %v501
    %v534 = vunpack.c.l.b16 %v502
    %v535 = vunpack.c.l.b16 %v503
    %v536 = vunpack.c.l.b16 %v504
    %v537 = vunpack.c.l.b16 %v505
    %v538 = vunpack.c.l.b16 %v506
    %v539 = vpack.c.b16 %v524, %v523
    %v540 = vpack.c.b16 %v526, %v525
    %v541 = vpack.c.b16 %v528, %v527
    %v542 = vpack.c.b16 %v530, %v529
    %v543 = vpack.c.b16 %v532, %v531
    %v544 = vpack.c.b16 %v534, %v533
    %v545 = vpack.c.b16 %v536, %v535
    %v546 = vpack.c.b16 %v538, %v537
    %555 = vmatprep.subr.bf16.mxu0 0
    %556 = vmatpush1.bf16.msra.mxu0 %v539
    %557 = vmatprep.subr.bf16.mxu0 0
    %558 = vmatpush1.bf16.msra.mxu0 %v540
    %559 = vmatprep.subr.bf16.mxu0 0
    %560 = vmatpush1.bf16.msra.mxu0 %v541
    %561 = vmatprep.subr.bf16.mxu0 0
    %562 = vmatpush1.bf16.msra.mxu0 %v542
    %563 = vmatprep.subr.bf16.mxu0 0
    %564 = vmatpush1.bf16.msra.mxu0 %v543
    %565 = vmatprep.subr.bf16.mxu0 0
    %566 = vmatpush1.bf16.msra.mxu0 %v544
    %567 = vmatprep.subr.bf16.mxu0 0
    %568 = vmatpush1.bf16.msra.mxu0 %v545
    %569 = vmatprep.subr.bf16.mxu0 0
    %570 = vmatpush1.bf16.msra.mxu0 %v546
    %571 = vmatprep.subr.bf16.mxu0 0
    %572 = vmatpush1.bf16.msra.mxu0 0
    %573 = vmatprep.subr.bf16.mxu0 0
    %574 = vmatpush1.bf16.msra.mxu0 0
    %575 = vmatprep.subr.bf16.mxu0 0
    %576 = vmatpush1.bf16.msra.mxu0 0
    %577 = vmatprep.subr.bf16.mxu0 0
    %578 = vmatpush1.bf16.msra.mxu0 0
    %579 = vmatprep.subr.bf16.mxu0 0
    %580 = vmatpush1.bf16.msra.mxu0 0
    %581 = vmatprep.subr.bf16.mxu0 0
    %582 = vmatpush1.bf16.msra.mxu0 0
    %583 = vmatprep.subr.bf16.mxu0 0
    %584 = vmatpush1.bf16.msra.mxu0 0
    %585 = vmatprep.subr.bf16.mxu0 0
    %586 = vmatpush1.bf16.msra.mxu0 0
    %587 = vmatprep.mubr.bf16.mxu0 0
    %588 = vmatmul.mubr.bf16.gmra.mrb[0].mxu0 %v483
    %v589 = vpop.f32.mrb[0].mxu0
    %v590 = vadd.f32 0.0, %v589
    %v591 = vpop.f32.mrb[0].mxu0
    %v592 = vpop.f32.mrb[0].mxu0
    %v593 = vadd.f32 0.0, %v592
    %v594 = vpop.f32.mrb[0].mxu0
    %595 = vmatprep.mubr.bf16.mxu0 0
    %596 = vmatmul.mubr.bf16.gmra.mrb[0].mxu0 %v484
    %v597 = vpop.f32.mrb[0].mxu0
    %v598 = vadd.f32 0.0, %v597
    %v599 = vpop.f32.mrb[0].mxu0
    %v600 = vpop.f32.mrb[0].mxu0
    %v601 = vadd.f32 0.0, %v600
    %v602 = vpop.f32.mrb[0].mxu0
    %603 = vmatprep.mubr.bf16.mxu0 0
    %604 = vmatmul.mubr.bf16.gmra.mrb[0].mxu0 %v485
    %v605 = vpop.f32.mrb[0].mxu0
    %v606 = vadd.f32 0.0, %v605
    %v607 = vpop.f32.mrb[0].mxu0
    %v608 = vpop.f32.mrb[0].mxu0
    %v609 = vadd.f32 0.0, %v608
    %v610 = vpop.f32.mrb[0].mxu0
    %611 = vmatprep.mubr.bf16.mxu0 0
    %612 = vmatmul.mubr.bf16.gmra.mrb[0].mxu0 %v486
    %v613 = vpop.f32.mrb[0].mxu0
    %v614 = vadd.f32 0.0, %v613
    %v615 = vpop.f32.mrb[0].mxu0
    %v616 = vpop.f32.mrb[0].mxu0
    %v617 = vadd.f32 0.0, %v616
    %v618 = vpop.f32.mrb[0].mxu0
    %619 = vmatprep.mubr.bf16.mxu0 0
    %620 = vmatmul.mubr.bf16.gmra.mrb[0].mxu0 %v487
    %v621 = vpop.f32.mrb[0].mxu0
    %v622 = vadd.f32 0.0, %v621
    %v623 = vpop.f32.mrb[0].mxu0
    %v624 = vpop.f32.mrb[0].mxu0
    %v625 = vadd.f32 0.0, %v624
    %v626 = vpop.f32.mrb[0].mxu0
    %627 = vmatprep.mubr.bf16.mxu0 0
    %628 = vmatmul.mubr.bf16.gmra.mrb[0].mxu0 %v488
    %v629 = vpop.f32.mrb[0].mxu0
    %v630 = vadd.f32 0.0, %v629
    %v631 = vpop.f32.mrb[0].mxu0
    %v632 = vpop.f32.mrb[0].mxu0
    %v633 = vadd.f32 0.0, %v632
    %v634 = vpop.f32.mrb[0].mxu0
    %635 = vmatprep.mubr.bf16.mxu0 0
    %636 = vmatmul.mubr.bf16.gmra.mrb[0].mxu0 %v489
    %v637 = vpop.f32.mrb[0].mxu0
    %v638 = vadd.f32 0.0, %v637
    %v639 = vpop.f32.mrb[0].mxu0
    %v640 = vpop.f32.mrb[0].mxu0
    %v641 = vadd.f32 0.0, %v640
    %v642 = vpop.f32.mrb[0].mxu0
    %643 = vmatprep.mubr.bf16.mxu0 0
    %644 = vmatmul.mubr.bf16.gmra.mrb[0].mxu0 %v490
    %v645 = vpop.f32.mrb[0].mxu0
    %v646 = vadd.f32 0.0, %v645
    %v647 = vpop.f32.mrb[0].mxu0
    %v648 = vpop.f32.mrb[0].mxu0
    %v649 = vadd.f32 0.0, %v648
    %v650 = vpop.f32.mrb[0].mxu0
    %651 = vdwg.mxu0
    %v652 = vpack.c.bf16 %v593, %v590
    %v653 = vpack.c.bf16 %v601, %v598
    %v654 = vpack.c.bf16 %v609, %v606
    %v655 = vpack.c.bf16 %v617, %v614
    %v656 = vpack.c.bf16 %v625, %v622
    %v657 = vpack.c.bf16 %v633, %v630
    %v658 = vpack.c.bf16 %v641, %v638
    %v659 = vpack.c.bf16 %v649, %v646
    %v660 = vld [vmem:[%s5] sm:$0x1]
    %v662 = vlaneseq
    %v663 = vshrl.u32 %v662, 7
    %v664 = vsub.s32 0, %v663
    %v665 = vrot.slane %v660, %v664
    %667 = vmatprep.subr.bf16.mxu0 0
    %668 = vmatpush1.bf16.msra.mxu0 %v652
    %669 = vmatprep.subr.bf16.mxu0 0
    %670 = vmatpush1.bf16.msra.mxu0 %v653
    %671 = vmatprep.subr.bf16.mxu0 0
    %672 = vmatpush1.bf16.msra.mxu0 %v654
    %673 = vmatprep.subr.bf16.mxu0 0
    %674 = vmatpush1.bf16.msra.mxu0 %v655
    %675 = vmatprep.subr.bf16.mxu0 0
    %676 = vmatpush1.bf16.msra.mxu0 %v656
    %677 = vmatprep.subr.bf16.mxu0 0
    %678 = vmatpush1.bf16.msra.mxu0 %v657
    %679 = vmatprep.subr.bf16.mxu0 0
    %680 = vmatpush1.bf16.msra.mxu0 %v658
    %681 = vmatprep.subr.bf16.mxu0 0
    %682 = vmatpush1.bf16.msra.mxu0 %v659
    %683 = vmatprep.subr.bf16.mxu0 0
    %684 = vmatpush1.bf16.msra.mxu0 0
    %685 = vmatprep.subr.bf16.mxu0 0
    %686 = vmatpush1.bf16.msra.mxu0 0
    %687 = vmatprep.subr.bf16.mxu0 0
    %688 = vmatpush1.bf16.msra.mxu0 0
    %689 = vmatprep.subr.bf16.mxu0 0
    %690 = vmatpush1.bf16.msra.mxu0 0
    %691 = vmatprep.subr.bf16.mxu0 0
    %692 = vmatpush1.bf16.msra.mxu0 0
    %693 = vmatprep.subr.bf16.mxu0 0
    %694 = vmatpush1.bf16.msra.mxu0 0
    %695 = vmatprep.subr.bf16.mxu0 0
    %696 = vmatpush1.bf16.msra.mxu0 0
    %697 = vmatprep.subr.bf16.mxu0 0
    %698 = vmatpush1.bf16.msra.mxu0 0
    %699 = vmatprep.mubr.bf16.mxu0 0
    %700 = vmatmul.mubr.bf16.gmra.mrb[0].mxu0 %v128
    %v701 = vpop.f32.mrb[0].mxu0
    %v702 = vadd.f32 %v665, %v701
    %v703 = vpop.f32.mrb[0].mxu0
    %v704 = vpop.f32.mrb[0].mxu0
    %v705 = vadd.f32 %v665, %v704
    %v706 = vpop.f32.mrb[0].mxu0
    %707 = vmatprep.mubr.bf16.mxu0 0
    %708 = vmatmul.mubr.bf16.gmra.mrb[0].mxu0 %v129
    %v709 = vpop.f32.mrb[0].mxu0
    %v710 = vadd.f32 %v665, %v709
    %v711 = vpop.f32.mrb[0].mxu0
    %v712 = vpop.f32.mrb[0].mxu0
    %v713 = vadd.f32 %v665, %v712
    %v714 = vpop.f32.mrb[0].mxu0
    %715 = vmatprep.mubr.bf16.mxu0 0
    %716 = vmatmul.mubr.bf16.gmra.mrb[0].mxu0 %v130
    %v717 = vpop.f32.mrb[0].mxu0
    %v718 = vadd.f32 %v665, %v717
    %v719 = vpop.f32.mrb[0].mxu0
    %v720 = vpop.f32.mrb[0].mxu0
    %v721 = vadd.f32 %v665, %v720
    %v722 = vpop.f32.mrb[0].mxu0
    %723 = vmatprep.mubr.bf16.mxu0 0
    %724 = vmatmul.mubr.bf16.gmra.mrb[0].mxu0 %v131
    %v725 = vpop.f32.mrb[0].mxu0
    %v726 = vadd.f32 %v665, %v725
    %v727 = vpop.f32.mrb[0].mxu0
    %v728 = vpop.f32.mrb[0].mxu0
    %v729 = vadd.f32 %v665, %v728
    %v730 = vpop.f32.mrb[0].mxu0
    %731 = vmatprep.mubr.bf16.mxu0 0
    %732 = vmatmul.mubr.bf16.gmra.mrb[0].mxu0 %v132
    %v733 = vpop.f32.mrb[0].mxu0
    %v734 = vadd.f32 %v665, %v733
    %v735 = vpop.f32.mrb[0].mxu0
    %v736 = vpop.f32.mrb[0].mxu0
    %v737 = vadd.f32 %v665, %v736
    %v738 = vpop.f32.mrb[0].mxu0
    %739 = vmatprep.mubr.bf16.mxu0 0
    %740 = vmatmul.mubr.bf16.gmra.mrb[0].mxu0 %v133
    %v741 = vpop.f32.mrb[0].mxu0
    %v742 = vadd.f32 %v665, %v741
    %v743 = vpop.f32.mrb[0].mxu0
    %v744 = vpop.f32.mrb[0].mxu0
    %v745 = vadd.f32 %v665, %v744
    %v746 = vpop.f32.mrb[0].mxu0
    %747 = vmatprep.mubr.bf16.mxu0 0
    %748 = vmatmul.mubr.bf16.gmra.mrb[0].mxu0 %v134
    %v749 = vpop.f32.mrb[0].mxu0
    %v750 = vadd.f32 %v665, %v749
    %v751 = vpop.f32.mrb[0].mxu0
    %v752 = vpop.f32.mrb[0].mxu0
    %v753 = vadd.f32 %v665, %v752
    %v754 = vpop.f32.mrb[0].mxu0
    %755 = vmatprep.mubr.bf16.mxu0 0
    %756 = vmatmul.mubr.bf16.gmra.mrb[0].mxu0 %v135
    %v757 = vpop.f32.mrb[0].mxu0
    %v758 = vadd.f32 %v665, %v757
    %v759 = vpop.f32.mrb[0].mxu0
    %v760 = vpop.f32.mrb[0].mxu0
    %v761 = vadd.f32 %v665, %v760
    %v762 = vpop.f32.mrb[0].mxu0
    %763 = vdwg.mxu0
    %vm764 = vcmp.gt.f32.partialorder %v702, 0.0
    %vm765 = vcmp.gt.f32.partialorder %v705, 0.0
    %vm766 = vcmp.gt.f32.partialorder %v710, 0.0
    %vm767 = vcmp.gt.f32.partialorder %v713, 0.0
    %vm768 = vcmp.gt.f32.partialorder %v718, 0.0
    %vm769 = vcmp.gt.f32.partialorder %v721, 0.0
    %vm770 = vcmp.gt.f32.partialorder %v726, 0.0
    %vm771 = vcmp.gt.f32.partialorder %v729, 0.0
    %vm772 = vcmp.gt.f32.partialorder %v734, 0.0
    %vm773 = vcmp.gt.f32.partialorder %v737, 0.0
    %vm774 = vcmp.gt.f32.partialorder %v742, 0.0
    %vm775 = vcmp.gt.f32.partialorder %v745, 0.0
    %vm776 = vcmp.gt.f32.partialorder %v750, 0.0
    %vm777 = vcmp.gt.f32.partialorder %v753, 0.0
    %vm778 = vcmp.gt.f32.partialorder %v758, 0.0
    %vm779 = vcmp.gt.f32.partialorder %v761, 0.0
    %v780 = vmul.f32 %v450, %v702
    %v781 = vmul.f32 %v450, %v705
    %v782 = vmul.f32 %v450, %v710
    %v783 = vmul.f32 %v450, %v713
    %v784 = vmul.f32 %v450, %v718
    %v785 = vmul.f32 %v450, %v721
    %v786 = vmul.f32 %v450, %v726
    %v787 = vmul.f32 %v450, %v729
    %v788 = vmul.f32 %v450, %v734
    %v789 = vmul.f32 %v450, %v737
    %v790 = vmul.f32 %v450, %v742
    %v791 = vmul.f32 %v450, %v745
    %v792 = vmul.f32 %v450, %v750
    %v793 = vmul.f32 %v450, %v753
    %v794 = vmul.f32 %v450, %v758
    %v795 = vmul.f32 %v450, %v761
    %v796 = vsel %vm764, %v702, %v780
    %v797 = vsel %vm765, %v705, %v781
    %v798 = vsel %vm766, %v710, %v782
    %v799 = vsel %vm767, %v713, %v783
    %v800 = vsel %vm768, %v718, %v784
    %v801 = vsel %vm769, %v721, %v785
    %v802 = vsel %vm770, %v726, %v786
    %v803 = vsel %vm771, %v729, %v787
    %v804 = vsel %vm772, %v734, %v788
    %v805 = vsel %vm773, %v737, %v789
    %v806 = vsel %vm774, %v742, %v790
    %v807 = vsel %vm775, %v745, %v791
    %v808 = vsel %vm776, %v750, %v792
    %v809 = vsel %vm777, %v753, %v793
    %v810 = vsel %vm778, %v758, %v794
    %v811 = vsel %vm779, %v761, %v795
    %v812 = vpack.c.bf16 %v797, %v796
    %v813 = vpack.c.bf16 %v799, %v798
    %v814 = vpack.c.bf16 %v801, %v800
    %v815 = vpack.c.bf16 %v803, %v802
    %v816 = vpack.c.bf16 %v805, %v804
    %v817 = vpack.c.bf16 %v807, %v806
    %v818 = vpack.c.bf16 %v809, %v808
    %v819 = vpack.c.bf16 %v811, %v810
    %v820 = vld [vmem:[#allocation6] sm:$0xf]
    %v821 = vld [vmem:[#allocation6 + $0x4] sm:$0xf]
    %v822 = vld [vmem:[#allocation6 + $0x8] sm:$0xf]
    %v823 = vld [vmem:[#allocation6 + $0xc] sm:$0xf]
    %v824 = vld [vmem:[#allocation6 + $0x10] sm:$0xf]
    %v825 = vld [vmem:[#allocation6 + $0x14] sm:$0xf]
    %v826 = vld [vmem:[#allocation6 + $0x18] sm:$0xf]
    %v827 = vld [vmem:[#allocation6 + $0x1c] sm:$0xf]
    %v828 = vld [vmem:[#allocation6 + $0x20] sm:$0xf]
    %v829 = vld [vmem:[#allocation6 + $0x24] sm:$0xf]
    %v830 = vld [vmem:[#allocation6 + $0x28] sm:$0xf]
    %v831 = vld [vmem:[#allocation6 + $0x2c] sm:$0xf]
    %v832 = vld [vmem:[#allocation6 + $0x30] sm:$0xf]
    %v833 = vld [vmem:[#allocation6 + $0x34] sm:$0xf]
    %v834 = vld [vmem:[#allocation6 + $0x38] sm:$0xf]
    %v835 = vld [vmem:[#allocation6 + $0x3c] sm:$0xf]
    %v836 = vld [vmem:[%s7] sm:$0x1]
    %v838 = vlaneseq
    %v839 = vshrl.u32 %v838, 7
    %v840 = vsub.s32 0, %v839
    %v841 = vrot.slane %v836, %v840
    %v859 = vunpack.c.l.b16 %v820
    %v860 = vunpack.c.l.b16 %v821
    %v861 = vunpack.c.l.b16 %v822
    %v862 = vunpack.c.l.b16 %v823
    %v863 = vunpack.c.l.b16 %v824
    %v864 = vunpack.c.l.b16 %v825
    %v865 = vunpack.c.l.b16 %v826
    %v866 = vunpack.c.l.b16 %v827
    %v867 = vunpack.c.l.b16 %v828
    %v868 = vunpack.c.l.b16 %v829
    %v869 = vunpack.c.l.b16 %v830
    %v870 = vunpack.c.l.b16 %v831
    %v871 = vunpack.c.l.b16 %v832
    %v872 = vunpack.c.l.b16 %v833
    %v873 = vunpack.c.l.b16 %v834
    %v874 = vunpack.c.l.b16 %v835
    %v875 = vpack.c.b16 %v860, %v859
    %v876 = vpack.c.b16 %v862, %v861
    %v877 = vpack.c.b16 %v864, %v863
    %v878 = vpack.c.b16 %v866, %v865
    %v879 = vpack.c.b16 %v868, %v867
    %v880 = vpack.c.b16 %v870, %v869
    %v881 = vpack.c.b16 %v872, %v871
    %v882 = vpack.c.b16 %v874, %v873
    %891 = vmatprep.subr.bf16.mxu0 0
    %892 = vmatpush1.bf16.msra.mxu0 %v875
    %893 = vmatprep.subr.bf16.mxu0 0
    %894 = vmatpush1.bf16.msra.mxu0 %v876
    %895 = vmatprep.subr.bf16.mxu0 0
    %896 = vmatpush1.bf16.msra.mxu0 %v877
    %897 = vmatprep.subr.bf16.mxu0 0
    %898 = vmatpush1.bf16.msra.mxu0 %v878
    %899 = vmatprep.subr.bf16.mxu0 0
    %900 = vmatpush1.bf16.msra.mxu0 %v879
    %901 = vmatprep.subr.bf16.mxu0 0
    %902 = vmatpush1.bf16.msra.mxu0 %v880
    %903 = vmatprep.subr.bf16.mxu0 0
    %904 = vmatpush1.bf16.msra.mxu0 %v881
    %905 = vmatprep.subr.bf16.mxu0 0
    %906 = vmatpush1.bf16.msra.mxu0 %v882
    %907 = vmatprep.subr.bf16.mxu0 0
    %908 = vmatpush1.bf16.msra.mxu0 0
    %909 = vmatprep.subr.bf16.mxu0 0
    %910 = vmatpush1.bf16.msra.mxu0 0
    %911 = vmatprep.subr.bf16.mxu0 0
    %912 = vmatpush1.bf16.msra.mxu0 0
    %913 = vmatprep.subr.bf16.mxu0 0
    %914 = vmatpush1.bf16.msra.mxu0 0
    %915 = vmatprep.subr.bf16.mxu0 0
    %916 = vmatpush1.bf16.msra.mxu0 0
    %917 = vmatprep.subr.bf16.mxu0 0
    %918 = vmatpush1.bf16.msra.mxu0 0
    %919 = vmatprep.subr.bf16.mxu0 0
    %920 = vmatpush1.bf16.msra.mxu0 0
    %921 = vmatprep.subr.bf16.mxu0 0
    %922 = vmatpush1.bf16.msra.mxu0 0
    %923 = vmatprep.mubr.bf16.mxu0 0
    %924 = vmatmul.mubr.bf16.gmra.mrb[0].mxu0 %v812
    %v925 = vpop.f32.mrb[0].mxu0
    %v926 = vadd.f32 %v841, %v925
    %v927 = vpop.f32.mrb[0].mxu0
    %v928 = vpop.f32.mrb[0].mxu0
    %v929 = vadd.f32 %v841, %v928
    %v930 = vpop.f32.mrb[0].mxu0
    %931 = vmatprep.mubr.bf16.mxu0 0
    %932 = vmatmul.mubr.bf16.gmra.mrb[0].mxu0 %v813
    %v933 = vpop.f32.mrb[0].mxu0
    %v934 = vadd.f32 %v841, %v933
    %v935 = vpop.f32.mrb[0].mxu0
    %v936 = vpop.f32.mrb[0].mxu0
    %v937 = vadd.f32 %v841, %v936
    %v938 = vpop.f32.mrb[0].mxu0
    %939 = vmatprep.mubr.bf16.mxu0 0
    %940 = vmatmul.mubr.bf16.gmra.mrb[0].mxu0 %v814
    %v941 = vpop.f32.mrb[0].mxu0
    %v942 = vadd.f32 %v841, %v941
    %v943 = vpop.f32.mrb[0].mxu0
    %v944 = vpop.f32.mrb[0].mxu0
    %v945 = vadd.f32 %v841, %v944
    %v946 = vpop.f32.mrb[0].mxu0
    %947 = vmatprep.mubr.bf16.mxu0 0
    %948 = vmatmul.mubr.bf16.gmra.mrb[0].mxu0 %v815
    %v949 = vpop.f32.mrb[0].mxu0
    %v950 = vadd.f32 %v841, %v949
    %v951 = vpop.f32.mrb[0].mxu0
    %v952 = vpop.f32.mrb[0].mxu0
    %v953 = vadd.f32 %v841, %v952
    %v954 = vpop.f32.mrb[0].mxu0
    %955 = vmatprep.mubr.bf16.mxu0 0
    %956 = vmatmul.mubr.bf16.gmra.mrb[0].mxu0 %v816
    %v957 = vpop.f32.mrb[0].mxu0
    %v958 = vadd.f32 %v841, %v957
    %v959 = vpop.f32.mrb[0].mxu0
    %v960 = vpop.f32.mrb[0].mxu0
    %v961 = vadd.f32 %v841, %v960
    %v962 = vpop.f32.mrb[0].mxu0
    %963 = vmatprep.mubr.bf16.mxu0 0
    %964 = vmatmul.mubr.bf16.gmra.mrb[0].mxu0 %v817
    %v965 = vpop.f32.mrb[0].mxu0
    %v966 = vadd.f32 %v841, %v965
    %v967 = vpop.f32.mrb[0].mxu0
    %v968 = vpop.f32.mrb[0].mxu0
    %v969 = vadd.f32 %v841, %v968
    %v970 = vpop.f32.mrb[0].mxu0
    %971 = vmatprep.mubr.bf16.mxu0 0
    %972 = vmatmul.mubr.bf16.gmra.mrb[0].mxu0 %v818
    %v973 = vpop.f32.mrb[0].mxu0
    %v974 = vadd.f32 %v841, %v973
    %v975 = vpop.f32.mrb[0].mxu0
    %v976 = vpop.f32.mrb[0].mxu0
    %v977 = vadd.f32 %v841, %v976
    %v978 = vpop.f32.mrb[0].mxu0
    %979 = vmatprep.mubr.bf16.mxu0 0
    %980 = vmatmul.mubr.bf16.gmra.mrb[0].mxu0 %v819
    %v981 = vpop.f32.mrb[0].mxu0
    %v982 = vadd.f32 %v841, %v981
    %v983 = vpop.f32.mrb[0].mxu0
    %v984 = vpop.f32.mrb[0].mxu0
    %v985 = vadd.f32 %v841, %v984
    %v986 = vpop.f32.mrb[0].mxu0
    %987 = vdwg.mxu0
    %v988 = vpack.c.bf16 %v929, %v926
    %v989 = vpack.c.bf16 %v937, %v934
    %v990 = vpack.c.bf16 %v945, %v942
    %v991 = vpack.c.bf16 %v953, %v950
    %v992 = vpack.c.bf16 %v961, %v958
    %v993 = vpack.c.bf16 %v969, %v966
    %v994 = vpack.c.bf16 %v977, %v974
    %v995 = vpack.c.bf16 %v985, %v982
    %v1004 = vunpack.c.l.b16 %v988
    %v1005 = vunpack.c.h.b16 %v988
    %v1006 = vunpack.c.l.b16 %v989
    %v1007 = vunpack.c.h.b16 %v989
    %v1008 = vunpack.c.l.b16 %v990
    %v1009 = vunpack.c.h.b16 %v990
    %v1010 = vunpack.c.l.b16 %v991
    %v1011 = vunpack.c.h.b16 %v991
    %v1012 = vunpack.c.l.b16 %v992
    %v1013 = vunpack.c.h.b16 %v992
    %v1014 = vunpack.c.l.b16 %v993
    %v1015 = vunpack.c.h.b16 %v993
    %v1016 = vunpack.c.l.b16 %v994
    %v1017 = vunpack.c.h.b16 %v994
    %v1018 = vunpack.c.l.b16 %v995
    %v1019 = vunpack.c.h.b16 %v995
    %v1020 = vpack.c.b16 %v1004, %v1004
    %v1021 = vpack.c.b16 %v1005, %v1005
    %v1022 = vpack.c.b16 %v1006, %v1006
    %v1023 = vpack.c.b16 %v1007, %v1007
    %v1024 = vpack.c.b16 %v1008, %v1008
    %v1025 = vpack.c.b16 %v1009, %v1009
    %v1026 = vpack.c.b16 %v1010, %v1010
    %v1027 = vpack.c.b16 %v1011, %v1011
    %v1028 = vpack.c.b16 %v1012, %v1012
    %v1029 = vpack.c.b16 %v1013, %v1013
    %v1030 = vpack.c.b16 %v1014, %v1014
    %v1031 = vpack.c.b16 %v1015, %v1015
    %v1032 = vpack.c.b16 %v1016, %v1016
    %v1033 = vpack.c.b16 %v1017, %v1017
    %v1034 = vpack.c.b16 %v1018, %v1018
    %v1035 = vpack.c.b16 %v1019, %v1019
    %1052 = vst [vmem:[#allocation8] sm:$0xf] %v1020
    %1053 = vst [vmem:[#allocation8 + $0x4] sm:$0xf] %v1021
    %1054 = vst [vmem:[#allocation8 + $0x8] sm:$0xf] %v1022
    %1055 = vst [vmem:[#allocation8 + $0xc] sm:$0xf] %v1023
    %1056 = vst [vmem:[#allocation8 + $0x10] sm:$0xf] %v1024
    %1057 = vst [vmem:[#allocation8 + $0x14] sm:$0xf] %v1025
    %1058 = vst [vmem:[#allocation8 + $0x18] sm:$0xf] %v1026
    %1059 = vst [vmem:[#allocation8 + $0x1c] sm:$0xf] %v1027
    %1060 = vst [vmem:[#allocation8 + $0x20] sm:$0xf] %v1028
    %1061 = vst [vmem:[#allocation8 + $0x24] sm:$0xf] %v1029
    %1062 = vst [vmem:[#allocation8 + $0x28] sm:$0xf] %v1030
    %1063 = vst [vmem:[#allocation8 + $0x2c] sm:$0xf] %v1031
    %1064 = vst [vmem:[#allocation8 + $0x30] sm:$0xf] %v1032
    %1065 = vst [vmem:[#allocation8 + $0x34] sm:$0xf] %v1033
    %1066 = vst [vmem:[#allocation8 + $0x38] sm:$0xf] %v1034
    %1067 = vst [vmem:[#allocation8 + $0x3c] sm:$0xf] %v1035
    // Predicated region
    $region46: #{tpu_custom_call.1} parent=1 // pred_check
      _
    $region47: #{tpu_custom_call.1} parent=1 // pred_check_branch
      %1069 = sbr.rel (0) target = $region49
    $region48: #{tpu_custom_call.1} parent=1 // pred_region
      %s1071 = ssub.s32 1024, 1024
      %1072 = vsyncadd [#allocation5], %s1071
      %s1073 = sshll.u32 [#allocation8], 4
      %s1074 = int_to_ptr.vmem [resolvable:$true] %s1073
      %1079 = dma.vmem_to_hbm [thread:$0]  %s1074, 1024, %s9, [#allocation5], 64, 64, 4
    $region49: #{tpu_custom_call.1} parent=1 // pred_fallthru
      _
    // Predicated region
    $region50: #{tpu_custom_call.1} parent=1 // pred_check
      _
    $region51: #{tpu_custom_call.1} parent=1 // pred_check_branch
      %1081 = sbr.rel (0) target = $region53
    $region52: #{tpu_custom_call.1} parent=1 // pred_region
      %1082 = dma.done [#allocation5], 1024
    $region53: #{tpu_custom_call.1} parent=1 // pred_fallthru
      _
    %1083 = vsyncpa [#allocation4], 1
    %1084 = vsyncpa [#allocation7], 1
    %1085 = vsyncpa [#allocation5], 1

</llo_original>
